<compile_context>
chip_gen: v7x
topology: tpu7x:2x2x1
jax: 0.10.0
libtpu: 0.0.40
codegen_flags: <defaults>
</compile_context>

<pallas_src>
import functools

import jax
import jax.numpy as jnp
from jax.experimental import pallas as pl
from jax.experimental.pallas import tpu as pltpu


def rnn2_kernel(x_ref, h_ref, w_in_ref, w_hid_ref, b_ref, slab_ref, *, hidden_size):
    # z = [input, hidden] @ W_fused + b_fused   (concat expressed as split-K sum)
    z = jnp.dot(x_ref[...], w_in_ref[...], preferred_element_type=jnp.float32)
    z = z + jnp.dot(h_ref[...], w_hid_ref[...], preferred_element_type=jnp.float32)
    z = z + b_ref[...]                                   # (1, Npad) -> (B, Npad)
    # ReLU only on the hidden columns [0, H); the output column H passes through.
    col = jax.lax.broadcasted_iota(jnp.int32, z.shape, dimension=1)
    slab_ref[...] = jnp.where(col < hidden_size, jnp.maximum(z, 0.0), z)


def fuse_rnn2_params(w_h, b_h, w_o, b_o, input_size):
    """Pack W_h (I+H,H), W_o (I+H,1), b_h (H,), b_o (1,) into one lane-dense
    fused weight, split along K into the input / hidden halves.

    Returns (w_in (I, Npad), w_hid (H, Npad), b_fused (1, Npad)) with Npad=128k.
    """
    fan_in, hidden_size = w_h.shape
    n = hidden_size + 1
    n_pad = max(128, ((n + 127) // 128) * 128)

    w = jnp.zeros((fan_in, n_pad), jnp.float32)
    w = w.at[:, :hidden_size].set(w_h.astype(jnp.float32))
    w = w.at[:, hidden_size:hidden_size + 1].set(w_o.astype(jnp.float32))

    b = jnp.zeros((1, n_pad), jnp.float32)
    b = b.at[0, :hidden_size].set(jnp.ravel(b_h).astype(jnp.float32))
    b = b.at[0, hidden_size].set(jnp.ravel(b_o).astype(jnp.float32)[0])

    return w[:input_size], w[input_size:], b


@jax.jit
def rnn2_forward(input_layer, hidden, w_in, w_hid, b_fused):
    """input_layer: (B, I), hidden: (B, H)  ->  (new_hidden (B,H), output (B,1))."""
    B = input_layer.shape[0]
    H = hidden.shape[1]
    n_pad = w_in.shape[1]

    slab = pl.pallas_call(
        functools.partial(rnn2_kernel, hidden_size=H),
        out_shape=jax.ShapeDtypeStruct((B, n_pad), jnp.float32),
        in_specs=[
            pl.BlockSpec(memory_space=pltpu.VMEM),   # input   (B, I)
            pl.BlockSpec(memory_space=pltpu.VMEM),   # hidden  (B, H)
            pl.BlockSpec(memory_space=pltpu.VMEM),   # W_in    (I, Npad)
            pl.BlockSpec(memory_space=pltpu.VMEM),   # W_hid   (H, Npad)
            pl.BlockSpec(memory_space=pltpu.VMEM),   # b_fused (1, Npad)
        ],
        out_specs=pl.BlockSpec(memory_space=pltpu.VMEM),  # slab (B, Npad), lane-dense
    )(input_layer, hidden, w_in, w_hid, b_fused)

    new_hidden = slab[:, :H]          # (B, H)   relu already applied in-kernel
    output = slab[:, H:H + 1]         # (B, 1)
    return new_hidden, output


if __name__ == "__main__":
    # Small shapes consistent with the module's forward.
    B = 2             # batch
    INPUT_SIZE = 16   # I
    HIDDEN_SIZE = 32  # H

    key = jax.random.PRNGKey(0)
    k_in, k_h, k_wh, k_bh, k_wo, k_bo = jax.random.split(key, 6)

    # Deterministic parameter init (uniform, like torch Linear default scale).
    fan_in = INPUT_SIZE + HIDDEN_SIZE
    bound = float(fan_in) ** -0.5
    # Math layout: pre-transposed vs torch's (out, in) weight layout.
    w_h = jax.random.uniform(k_wh, (fan_in, HIDDEN_SIZE), jnp.float32, -bound, bound)
    b_h = jax.random.uniform(k_bh, (HIDDEN_SIZE,), jnp.float32, -bound, bound)
    w_o = jax.random.uniform(k_wo, (fan_in, 1), jnp.float32, -bound, bound)
    b_o = jax.random.uniform(k_bo, (1,), jnp.float32, -bound, bound)

    # Example inputs.
    input_layer = jax.random.normal(k_in, (B, INPUT_SIZE), jnp.float32)
    hidden = jax.random.normal(k_h, (B, HIDDEN_SIZE), jnp.float32)

    # One-time weight fusion / packing (lane-dense fused weight + bias).
    w_in, w_hid, b_fused = fuse_rnn2_params(w_h, b_h, w_o, b_o, INPUT_SIZE)

    new_hidden, output = rnn2_forward(input_layer, hidden, w_in, w_hid, b_fused)
    jax.block_until_ready((new_hidden, output))

    # Pure-JAX reference check (matches the PyTorch RNN2 forward).
    combined = jnp.concatenate([input_layer, hidden], axis=1)
    ref_hidden = jnp.maximum(combined @ w_h + b_h[None, :], 0.0)
    ref_output = combined @ w_o + b_o[None, :]

    assert new_hidden.shape == (B, HIDDEN_SIZE)
    assert output.shape == (B, 1)
    assert jnp.allclose(new_hidden, ref_hidden, atol=1e-5, rtol=1e-5)
    assert jnp.allclose(output, ref_output, atol=1e-5, rtol=1e-5)

    print("KERNEL_OK")
</pallas_src>

<mosaic_0001>
module attributes {stable_mosaic.version = 11 : i64} {
  func.func @rnn2_kernel(%arg0: memref<2x16xf32, #tpu.memory_space<vmem>>, %arg1: memref<2x32xf32, #tpu.memory_space<vmem>>, %arg2: memref<16x128xf32, #tpu.memory_space<vmem>>, %arg3: memref<32x128xf32, #tpu.memory_space<vmem>>, %arg4: memref<1x128xf32, #tpu.memory_space<vmem>>, %arg5: memref<2x128xf32, #tpu.memory_space<vmem>>) attributes {dimension_semantics = [], scalar_prefetch = 0 : i64, scratch_operands = 0 : i64, tpu.core_type = #tpu.core_type<tc>} {
    %c0 = arith.constant 0 : index
    %c0_0 = arith.constant 0 : index
    %0 = vector.load %arg0[%c0, %c0_0] : memref<2x16xf32, #tpu.memory_space<vmem>>, vector<2x16xf32>
    %c0_1 = arith.constant 0 : index
    %c0_2 = arith.constant 0 : index
    %1 = vector.load %arg2[%c0_1, %c0_2] : memref<16x128xf32, #tpu.memory_space<vmem>>, vector<16x128xf32>
    %cst = arith.constant dense<0.000000e+00> : vector<2x128xf32>
    %2 = tpu.matmul %0, %1, %cst {dimension_numbers = #tpu.dot_dimension_numbers<[1], [0], [0], [1], [0, 0, 1, 1], [], []>} : vector<2x16xf32>, vector<16x128xf32>, vector<2x128xf32> -> vector<2x128xf32>
    %c0_3 = arith.constant 0 : index
    %c0_4 = arith.constant 0 : index
    %3 = vector.load %arg1[%c0_3, %c0_4] : memref<2x32xf32, #tpu.memory_space<vmem>>, vector<2x32xf32>
    %c0_5 = arith.constant 0 : index
    %c0_6 = arith.constant 0 : index
    %4 = vector.load %arg3[%c0_5, %c0_6] : memref<32x128xf32, #tpu.memory_space<vmem>>, vector<32x128xf32>
    %cst_7 = arith.constant dense<0.000000e+00> : vector<2x128xf32>
    %5 = tpu.matmul %3, %4, %cst_7 {dimension_numbers = #tpu.dot_dimension_numbers<[1], [0], [0], [1], [0, 0, 1, 1], [], []>} : vector<2x32xf32>, vector<32x128xf32>, vector<2x128xf32> -> vector<2x128xf32>
    %6 = arith.addf %2, %5 : vector<2x128xf32>
    %c0_8 = arith.constant 0 : index
    %c0_9 = arith.constant 0 : index
    %7 = vector.load %arg4[%c0_8, %c0_9] : memref<1x128xf32, #tpu.memory_space<vmem>>, vector<1x128xf32>
    %8 = vector.broadcast %7 : vector<1x128xf32> to vector<2x128xf32>
    %9 = arith.addf %6, %8 : vector<2x128xf32>
    %10 = tpu.iota {dimensions = array<i32: 1>} : vector<2x128xi32>
    %c32_i32 = arith.constant 32 : i32
    %11 = vector.broadcast %c32_i32 : i32 to vector<2x128xi32>
    %12 = arith.cmpi slt, %10, %11 : vector<2x128xi32>
    %cst_10 = arith.constant 0.000000e+00 : f32
    %13 = vector.broadcast %cst_10 : f32 to vector<2x128xf32>
    %14 = arith.maximumf %9, %13 : vector<2x128xf32>
    %15 = arith.select %12, %14, %9 : vector<2x128xi1>, vector<2x128xf32>
    %c0_11 = arith.constant 0 : index
    %c0_12 = arith.constant 0 : index
    %16 = vector.load %arg5[%c0_11, %c0_12] : memref<2x128xf32, #tpu.memory_space<vmem>>, vector<2x128xf32>
    tpu.vector_store %arg5[%c0_11, %c0_12], %15 {strides = array<i32>} : memref<2x128xf32, #tpu.memory_space<vmem>>, vector<2x128xf32>,
    return
  }
}

</mosaic_0001>

<llo_original>
// kernel: rnn2_forward.1
$region0: #{rnn2_forward.1}
  #allocation0 [shape = 'u32[]', space=smem, size = 0x4, offset = 0x4, fixed_abs, tag = 'smem constant byte address 0x4 - core index']
  #allocation1 [shape = 'u32[144,128]{1,0:T(1,128)}', space=vmem, size = 0x12000, scoped, tag = 'internal scratch']
  %s0 = inlined_call_operand.hbm [shape: f32[2,16], index: 0, kind: input, shape index: {}]
  %s1 = inlined_call_operand.vmem [shape: f32[2,32], index: 1, kind: input, shape index: {}]
  %s2 = inlined_call_operand.hbm [shape: f32[16,128], index: 2, kind: input, shape index: {}]
  %s3 = inlined_call_operand.hbm [shape: f32[32,128], index: 3, kind: input, shape index: {}]
  %s4 = inlined_call_operand.vmem [shape: f32[1,128], index: 4, kind: input, shape index: {}]
  %s5 = inlined_call_operand.vmem [shape: f32[2,128], index: 5, kind: output, shape index: {}]
  %s6 = sld [smem:[#allocation0]]
  $region42: #{rnn2_forward.1} parent=0
    _
  %s8 = ssub.s32 1, %s6
  %s9 = scalar_select 0, %s8, %s6
  $region1: #{rnn2_forward.1} parent=0
    #allocation2 [shape = 'u8[1024]{0}', space=vmem, size = 0x400, scoped, tag = 'input window, operand 0, single buffered']
    #allocation3 [shape = 's32[1]{0}', space=sflag, size = 0x4, scoped, tag = 'scoped memory for rnn2_forward.1']
    #allocation4 [shape = 'u8[8192]{0}', space=vmem, size = 0x2000, scoped, tag = 'input window, operand 2, single buffered']
    #allocation5 [shape = 's32[1]{0}', space=sflag, size = 0x4, scoped, tag = 'scoped memory for rnn2_forward.1']
    #allocation6 [shape = 'u8[16384]{0}', space=vmem, size = 0x4000, scoped, tag = 'input window, operand 3, single buffered']
    %10 = vsyncpa [#allocation3], 0
    %11 = vsyncpa [#allocation5], 0
    // Predicated region
    $region2: #{rnn2_forward.1} parent=1 // pred_check
      _
    $region3: #{rnn2_forward.1} parent=1 // pred_check_branch
      %13 = sbr.rel (0) target = $region5
    $region4: #{rnn2_forward.1} parent=1 // pred_region
      %s15 = ssub.s32 32, 32
      %16 = vsyncadd [#allocation3], %s15
      %s18 = sshll.u32 [#allocation2], 4
      %s19 = int_to_ptr.vmem [resolvable:$true] %s18
      %21 = dma.hbm_to_vmem [thread:$0]  %s0, 32, %s19, [#allocation3]
    $region5: #{rnn2_forward.1} parent=1 // pred_fallthru
      _
    // Predicated region
    $region6: #{rnn2_forward.1} parent=1 // pred_check
      _
    $region7: #{rnn2_forward.1} parent=1 // pred_check_branch
      %23 = sbr.rel (0) target = $region9
    $region8: #{rnn2_forward.1} parent=1 // pred_region
      _
    $region9: #{rnn2_forward.1} parent=1 // pred_fallthru
      _
    // Predicated region
    $region10: #{rnn2_forward.1} parent=1 // pred_check
      _
    $region11: #{rnn2_forward.1} parent=1 // pred_check_branch
      %25 = sbr.rel (0) target = $region13
    $region12: #{rnn2_forward.1} parent=1 // pred_region
      %s27 = ssub.s32 256, 256
      %28 = vsyncadd [#allocation5], %s27
      %s29 = sshll.u32 [#allocation4], 4
      %s30 = int_to_ptr.vmem [resolvable:$true] %s29
      %35 = dma.hbm_to_vmem [thread:$0]  %s2, 256, %s30, [#allocation5], 128, 128, 8
    $region13: #{rnn2_forward.1} parent=1 // pred_fallthru
      _
    // Predicated region
    $region14: #{rnn2_forward.1} parent=1 // pred_check
      _
    $region15: #{rnn2_forward.1} parent=1 // pred_check_branch
      %37 = sbr.rel (0) target = $region17
    $region16: #{rnn2_forward.1} parent=1 // pred_region
      %s39 = ssub.s32 512, 512
      %40 = vsyncadd [#allocation5], %s39
      %s41 = sshll.u32 [#allocation6], 4
      %s42 = int_to_ptr.vmem [resolvable:$true] %s41
      %47 = dma.hbm_to_vmem [thread:$0]  %s3, 512, %s42, [#allocation5], 128, 128, 8
    $region17: #{rnn2_forward.1} parent=1 // pred_fallthru
      _
    // Predicated region
    $region18: #{rnn2_forward.1} parent=1 // pred_check
      _
    $region19: #{rnn2_forward.1} parent=1 // pred_check_branch
      %49 = sbr.rel (0) target = $region21
    $region20: #{rnn2_forward.1} parent=1 // pred_region
      _
    $region21: #{rnn2_forward.1} parent=1 // pred_fallthru
      _
    // Predicated region
    $region22: #{rnn2_forward.1} parent=1 // pred_check
      _
    $region23: #{rnn2_forward.1} parent=1 // pred_check_branch
      %51 = sbr.rel (0) target = $region25
    $region24: #{rnn2_forward.1} parent=1 // pred_region
      %52 = dma.done [#allocation3], 32
    $region25: #{rnn2_forward.1} parent=1 // pred_fallthru
      _
    // Predicated region
    $region26: #{rnn2_forward.1} parent=1 // pred_check
      _
    $region27: #{rnn2_forward.1} parent=1 // pred_check_branch
      %54 = sbr.rel (0) target = $region29
    $region28: #{rnn2_forward.1} parent=1 // pred_region
      %55 = dma.done [#allocation5], 256
    $region29: #{rnn2_forward.1} parent=1 // pred_fallthru
      _
    // Predicated region
    $region30: #{rnn2_forward.1} parent=1 // pred_check
      _
    $region31: #{rnn2_forward.1} parent=1 // pred_check_branch
      %57 = sbr.rel (0) target = $region33
    $region32: #{rnn2_forward.1} parent=1 // pred_region
      %58 = dma.done [#allocation5], 512
    $region33: #{rnn2_forward.1} parent=1 // pred_fallthru
      _
    %v59 = vld [vmem:[#allocation2] sm:$0x3]
    %v60 = vld [vmem:[#allocation4] sm:$0xff]
    %v61 = vld [vmem:[#allocation4 + $0x8] sm:$0xff]
    %v62 = vld [vmem:[%s1] sm:$0x3]
    %v63 = vld [vmem:[#allocation6] sm:$0xff]
    %v64 = vld [vmem:[#allocation6 + $0x8] sm:$0xff]
    %v65 = vld [vmem:[#allocation6 + $0x10] sm:$0xff]
    %v66 = vld [vmem:[#allocation6 + $0x18] sm:$0xff]
    %vm67 = vcmask 261120
    %v69 = vsel %vm67, %v62, 0
    %71 = vmatprep.subr.mxu0 0.0
    %72 = vmatpush1.msra.mxu0 %v63
    %73 = vmatprep.subr.mxu0 0.0
    %74 = vmatpush1.msra.mxu0 %v64
    %75 = vmatprep.subr.mxu0 0.0
    %76 = vmatpush1.msra.mxu0 %v65
    %77 = vmatprep.subr.mxu0 0.0
    %78 = vmatpush1.msra.mxu0 %v66
    %79 = vmatprep.subr.mxu0 0.0
    %80 = vmatpush1.msra.mxu0 0.0
    %81 = vmatprep.subr.mxu0 0.0
    %82 = vmatpush1.msra.mxu0 0.0
    %83 = vmatprep.subr.mxu0 0.0
    %84 = vmatpush1.msra.mxu0 0.0
    %85 = vmatprep.subr.mxu0 0.0
    %86 = vmatpush1.msra.mxu0 0.0
    %87 = vmatprep.subr.mxu0 0.0
    %88 = vmatpush1.msra.mxu0 0.0
    %89 = vmatprep.subr.mxu0 0.0
    %90 = vmatpush1.msra.mxu0 0.0
    %91 = vmatprep.subr.mxu0 0.0
    %92 = vmatpush1.msra.mxu0 0.0
    %93 = vmatprep.subr.mxu0 0.0
    %94 = vmatpush1.msra.mxu0 0.0
    %95 = vmatprep.subr.mxu0 0.0
    %96 = vmatpush1.msra.mxu0 0.0
    %97 = vmatprep.subr.mxu0 0.0
    %98 = vmatpush1.msra.mxu0 0.0
    %99 = vmatprep.subr.mxu0 0.0
    %100 = vmatpush1.msra.mxu0 0.0
    %101 = vmatprep.subr.mxu0 0.0
    %102 = vmatpush1.msra.mxu0 0.0
    %103 = vmatprep.subr.mxu0 0.0
    %104 = vmatpush1.msra.mxu0 0.0
    %105 = vmatprep.subr.mxu0 0.0
    %106 = vmatpush1.msra.mxu0 0.0
    %107 = vmatprep.subr.mxu0 0.0
    %108 = vmatpush1.msra.mxu0 0.0
    %109 = vmatprep.subr.mxu0 0.0
    %110 = vmatpush1.msra.mxu0 0.0
    %111 = vmatprep.subr.mxu0 0.0
    %112 = vmatpush1.msra.mxu0 0.0
    %113 = vmatprep.subr.mxu0 0.0
    %114 = vmatpush1.msra.mxu0 0.0
    %115 = vmatprep.subr.mxu0 0.0
    %116 = vmatpush1.msra.mxu0 0.0
    %117 = vmatprep.subr.mxu0 0.0
    %118 = vmatpush1.msra.mxu0 0.0
    %119 = vmatprep.subr.mxu0 0.0
    %120 = vmatpush1.msra.mxu0 0.0
    %121 = vmatprep.subr.mxu0 0.0
    %122 = vmatpush1.msra.mxu0 0.0
    %123 = vmatprep.subr.mxu0 0.0
    %124 = vmatpush1.msra.mxu0 0.0
    %125 = vmatprep.subr.mxu0 0.0
    %126 = vmatpush1.msra.mxu0 0.0
    %127 = vmatprep.subr.mxu0 0.0
    %128 = vmatpush1.msra.mxu0 0.0
    %129 = vmatprep.subr.mxu0 0.0
    %130 = vmatpush1.msra.mxu0 0.0
    %131 = vmatprep.subr.mxu0 0.0
    %132 = vmatpush1.msra.mxu0 0.0
    %133 = vmatprep.subr.mxu0 0.0
    %134 = vmatpush1.msra.mxu0 0.0
    %135 = vmatprep.mubr.f32.mxu0 0.0
    %136 = vmatmul.mubr.f32.gmra.mrb[0].mxu0 %v69
    %v137 = vpop.f32.mrb[0].mxu0
    %v138 = vadd.f32 0.0, %v137
    %v139 = vpop.f32.mrb[0].mxu0
    %140 = vdwg.mxu0
    %vm141 = vcmask 130048
    %v143 = vsel %vm141, %v59, 0
    %145 = vmatprep.subr.mxu0 0.0
    %146 = vmatpush1.msra.mxu0 %v60
    %147 = vmatprep.subr.mxu0 0.0
    %148 = vmatpush1.msra.mxu0 %v61
    %149 = vmatprep.subr.mxu0 0.0
    %150 = vmatpush1.msra.mxu0 0.0
    %151 = vmatprep.subr.mxu0 0.0
    %152 = vmatpush1.msra.mxu0 0.0
    %153 = vmatprep.subr.mxu0 0.0
    %154 = vmatpush1.msra.mxu0 0.0
    %155 = vmatprep.subr.mxu0 0.0
    %156 = vmatpush1.msra.mxu0 0.0
    %157 = vmatprep.subr.mxu0 0.0
    %158 = vmatpush1.msra.mxu0 0.0
    %159 = vmatprep.subr.mxu0 0.0
    %160 = vmatpush1.msra.mxu0 0.0
    %161 = vmatprep.subr.mxu0 0.0
    %162 = vmatpush1.msra.mxu0 0.0
    %163 = vmatprep.subr.mxu0 0.0
    %164 = vmatpush1.msra.mxu0 0.0
    %165 = vmatprep.subr.mxu0 0.0
    %166 = vmatpush1.msra.mxu0 0.0
    %167 = vmatprep.subr.mxu0 0.0
    %168 = vmatpush1.msra.mxu0 0.0
    %169 = vmatprep.subr.mxu0 0.0
    %170 = vmatpush1.msra.mxu0 0.0
    %171 = vmatprep.subr.mxu0 0.0
    %172 = vmatpush1.msra.mxu0 0.0
    %173 = vmatprep.subr.mxu0 0.0
    %174 = vmatpush1.msra.mxu0 0.0
    %175 = vmatprep.subr.mxu0 0.0
    %176 = vmatpush1.msra.mxu0 0.0
    %177 = vmatprep.subr.mxu0 0.0
    %178 = vmatpush1.msra.mxu0 0.0
    %179 = vmatprep.subr.mxu0 0.0
    %180 = vmatpush1.msra.mxu0 0.0
    %181 = vmatprep.subr.mxu0 0.0
    %182 = vmatpush1.msra.mxu0 0.0
    %183 = vmatprep.subr.mxu0 0.0
    %184 = vmatpush1.msra.mxu0 0.0
    %185 = vmatprep.subr.mxu0 0.0
    %186 = vmatpush1.msra.mxu0 0.0
    %187 = vmatprep.subr.mxu0 0.0
    %188 = vmatpush1.msra.mxu0 0.0
    %189 = vmatprep.subr.mxu0 0.0
    %190 = vmatpush1.msra.mxu0 0.0
    %191 = vmatprep.subr.mxu0 0.0
    %192 = vmatpush1.msra.mxu0 0.0
    %193 = vmatprep.subr.mxu0 0.0
    %194 = vmatpush1.msra.mxu0 0.0
    %195 = vmatprep.subr.mxu0 0.0
    %196 = vmatpush1.msra.mxu0 0.0
    %197 = vmatprep.subr.mxu0 0.0
    %198 = vmatpush1.msra.mxu0 0.0
    %199 = vmatprep.subr.mxu0 0.0
    %200 = vmatpush1.msra.mxu0 0.0
    %201 = vmatprep.subr.mxu0 0.0
    %202 = vmatpush1.msra.mxu0 0.0
    %203 = vmatprep.subr.mxu0 0.0
    %204 = vmatpush1.msra.mxu0 0.0
    %205 = vmatprep.subr.mxu0 0.0
    %206 = vmatpush1.msra.mxu0 0.0
    %207 = vmatprep.subr.mxu0 0.0
    %208 = vmatpush1.msra.mxu0 0.0
    %209 = vmatprep.mubr.f32.mxu0 0.0
    %210 = vmatmul.mubr.f32.gmra.mrb[0].mxu0 %v143
    %v211 = vpop.f32.mrb[0].mxu0
    %v212 = vadd.f32 %v138, %v211
    %v213 = vpop.f32.mrb[0].mxu0
    %214 = vdwg.mxu0
    %v215 = vld [vmem:[%s4] sm:$0x1]
    %v217 = vlaneseq
    %v218 = vshrl.u32 %v217, 7
    %v219 = vsub.s32 0, %v218
    %v220 = vrot.slane %v215, %v219
    %v222 = vadd.f32 %v212, %v220
    %v223 = vlaneseq
    %v224 = vand.u32 %v223, 127
    %vm225 = vcmp.lt.s32.totalorder %v224, 32
    %v226 = vmax.f32 %v222, 0.0
    %v227 = vsel %vm225, %v226, %v222
    %228 = vst [vmem:[%s5] sm:$0x3] %v227
    // Predicated region
    $region34: #{rnn2_forward.1} parent=1 // pred_check
      _
    $region35: #{rnn2_forward.1} parent=1 // pred_check_branch
      %230 = sbr.rel (0) target = $region37
    $region36: #{rnn2_forward.1} parent=1 // pred_region
      _
    $region37: #{rnn2_forward.1} parent=1 // pred_fallthru
      _
    // Predicated region
    $region38: #{rnn2_forward.1} parent=1 // pred_check
      _
    $region39: #{rnn2_forward.1} parent=1 // pred_check_branch
      %232 = sbr.rel (0) target = $region41
    $region40: #{rnn2_forward.1} parent=1 // pred_region
      _
    $region41: #{rnn2_forward.1} parent=1 // pred_fallthru
      _
    %233 = vsyncpa [#allocation3], 1
    %234 = vsyncpa [#allocation5], 1

</llo_original>
